<compile_context>
chip_gen: v7x
topology: tpu7x:2x2x1
jax: 0.10.0
libtpu: 0.0.40
codegen_flags: <defaults>
</compile_context>

<pallas_src>
import jax
import jax.numpy as jnp
from jax.experimental import pallas as pl
from jax.experimental.pallas import tpu as pltpu

NUM_ACTIONS = 2
SPLITS = (33, 33, 111, 7, 100)
STATE_DIM = sum(SPLITS)          # 284
EPS = 1e-5

H1 = 256                         # 4 x 64  fused first layers  (self, other, deck, hist)
H2 = 128                         # 4 x 32  fused second layers
H3 = 64                          # concat-head hidden
OUT_PAD = 128                    # lane-dense padded output (real Q-values in cols 0:2)

TANH1 = 192                      # tanh on first-layer lanes [0,192)  (not history)
TANH2 = 96                       # tanh on second-layer lanes [0,96)  (not history)

MAX_TB = 512                     # batch-tile rows per grid step


# ---------------------------------------------------------------------------
# Kernel: 5 bf16 matmuls (f32 accumulate) + 2 masked tanh, no layout shuffles
# ---------------------------------------------------------------------------
def estimator_kernel(s_ref, w1_ref, b1_ref, w2_ref, b2_ref,
                     w3a_ref, w3u_ref, b3_ref, w4_ref, b4_ref, out_ref):
    x = s_ref[...]                                            # bf16 (TB, 284)

    # fused branch layer 1 (BN affine already folded into W1/B1)
    h1 = jnp.dot(x, w1_ref[...], preferred_element_type=jnp.float32) + b1_ref[...]
    m1 = jax.lax.broadcasted_iota(jnp.int32, h1.shape, 1) < TANH1
    h1 = jnp.where(m1, jnp.tanh(h1), h1)                      # no tanh on history lanes

    # fused branch layer 2
    h2 = jnp.dot(h1.astype(jnp.bfloat16), w2_ref[...],
                 preferred_element_type=jnp.float32) + b2_ref[...]
    m2 = jax.lax.broadcasted_iota(jnp.int32, h2.shape, 1) < TANH2
    h2 = jnp.where(m2, jnp.tanh(h2), h2)

    # concat-head layer 1: summed partial matmuls instead of a lane concat
    h3 = (jnp.dot(h2.astype(jnp.bfloat16), w3a_ref[...],
                  preferred_element_type=jnp.float32)
          + jnp.dot(x, w3u_ref[...], preferred_element_type=jnp.float32)
          + b3_ref[...])

    # final head (zero-padded to 128 lanes -> unmasked lane-dense store)
    out_ref[...] = (jnp.dot(h3.astype(jnp.bfloat16), w4_ref[...],
                            preferred_element_type=jnp.float32) + b4_ref[...])


# ---------------------------------------------------------------------------
# Wrapper: BN stats + weight fusion in XLA, batch-gridded pallas_call
# ---------------------------------------------------------------------------
def _fuse_params(s, params):
    (g_self, b_self, g_other, b_other, g_deck, b_deck, g_uni, b_uni, g_hist, b_hist,
     w1s, c1s, w2s, c2s, w1o, c1o, w2o, c2o, w1d, c1d, w2d, c2d,
     w1h, c1h, w2h, c2h, w1c, c1c, w2c, c2c) = params

    # Training-mode BatchNorm statistics over the FULL batch (kept out of the
    # kernel so batch tiles stay independent -> megacore-parallel grid).
    mean = jnp.mean(s, axis=0, keepdims=True)
    var = jnp.mean(jnp.square(s - mean), axis=0, keepdims=True)
    gamma = jnp.concatenate([g_self, g_other, g_deck, g_uni, g_hist], axis=1)
    beta = jnp.concatenate([b_self, b_other, b_deck, b_uni, b_hist], axis=1)
    scale = gamma * jax.lax.rsqrt(var + EPS)                  # BN(x) = x*scale + shift
    shift = beta - mean * scale

    off = (0, 33, 66, 177, 184, 284)
    sc = [scale[:, off[i]:off[i + 1]] for i in range(5)]
    sh = [shift[:, off[i]:off[i + 1]] for i in range(5)]
    sc_s, sc_o, sc_d, sc_u, sc_h = sc
    sh_s, sh_o, sh_d, sh_u, sh_h = sh

    # fused block-diagonal first layer, BN folded:  BN(x)@W + b = x@(scale.T*W) + (shift@W + b)
    w1 = jnp.zeros((STATE_DIM, H1), jnp.float32)
    w1 = w1.at[0:33, 0:64].set(sc_s.T * w1s)
    w1 = w1.at[33:66, 64:128].set(sc_o.T * w1o)
    w1 = w1.at[66:177, 128:192].set(sc_d.T * w1d)
    w1 = w1.at[184:284, 192:256].set(sc_h.T * w1h)
    b1 = jnp.concatenate([sh_s @ w1s + c1s, sh_o @ w1o + c1o,
                          sh_d @ w1d + c1d, sh_h @ w1h + c1h], axis=1)   # (1,256)

    # fused block-diagonal second layer
    w2 = jnp.zeros((H1, H2), jnp.float32)
    w2 = w2.at[0:64, 0:32].set(w2s)
    w2 = w2.at[64:128, 32:64].set(w2o)
    w2 = w2.at[128:192, 64:96].set(w2d)
    w2 = w2.at[192:256, 96:128].set(w2h)
    b2 = jnp.concatenate([c2s, c2o, c2d, c2h], axis=1)                   # (1,128)

    # concat-head layer 1 split: PyTorch concat order is
    #   self(0:32) other(32:64) deck(64:96) unique(96:103) hist(103:135)
    w3a = jnp.concatenate([w1c[0:96, :], w1c[103:135, :]], axis=0)       # (128,64) acts on h2
    w1c_u = w1c[96:103, :]                                               # (7,64)
    w3u = jnp.zeros((STATE_DIM, H3), jnp.float32)
    w3u = w3u.at[177:184, :].set(sc_u.T * w1c_u)                         # BN(unique) folded onto raw state
    b3 = c1c + sh_u @ w1c_u                                              # (1,64)

    # final head zero-padded to 128 lanes
    w4 = jnp.zeros((H3, OUT_PAD), jnp.float32).at[:, 0:NUM_ACTIONS].set(w2c)
    b4 = jnp.zeros((1, OUT_PAD), jnp.float32).at[:, 0:NUM_ACTIONS].set(c2c)

    bf = jnp.bfloat16
    return (w1.astype(bf), b1, w2.astype(bf), b2,
            w3a.astype(bf), w3u.astype(bf), b3, w4.astype(bf), b4)


@jax.jit
def estimator_forward(s, params):
    B = s.shape[0]
    fused = _fuse_params(s, params)

    if B <= MAX_TB:
        tb, b_pad = B, B                        # single full-batch tile
    else:
        tb = MAX_TB
        b_pad = ((B + tb - 1) // tb) * tb       # pad batch to a tile multiple

    x = s.astype(jnp.bfloat16)                  # halve input DMA bytes
    if b_pad != B:
        x = jnp.pad(x, ((0, b_pad - B), (0, 0)))

    full_spec = lambda a: pl.BlockSpec(a.shape, lambda i: (0, 0))

    out = pl.pallas_call(
        estimator_kernel,
        out_shape=jax.ShapeDtypeStruct((b_pad, OUT_PAD), jnp.float32),
        grid=(b_pad // tb,),
        in_specs=[pl.BlockSpec((tb, STATE_DIM), lambda i: (i, 0))]
                 + [full_spec(a) for a in fused],
        out_specs=pl.BlockSpec((tb, OUT_PAD), lambda i: (i, 0)),
        compiler_params=pltpu.CompilerParams(
            dimension_semantics=("parallel",)),
    )(x, *fused)
    return out[:B, :NUM_ACTIONS]


# ---------------------------------------------------------------------------
# Deterministic parameter init (PyTorch nn.Linear default: U(-k, k), k=1/sqrt(fan_in))
# ---------------------------------------------------------------------------
def init_params(key):
    params = []
    for d in SPLITS:                                   # BN gamma=1, beta=0 per branch
        params.append(jnp.ones((1, d), jnp.float32))
        params.append(jnp.zeros((1, d), jnp.float32))

    def linear(key, fan_in, fan_out):
        kw, kb = jax.random.split(key)
        bound = 1.0 / jnp.sqrt(jnp.float32(fan_in))
        w = jax.random.uniform(kw, (fan_in, fan_out), jnp.float32, -bound, bound)
        b = jax.random.uniform(kb, (1, fan_out), jnp.float32, -bound, bound)
        return w, b

    layer_dims = [
        (33, 64), (64, 32),            # self
        (33, 64), (64, 32),            # other
        (111, 64), (64, 32),           # deck
        (100, 64), (64, 32),           # history
        (135, 64), (64, NUM_ACTIONS),  # concat head
    ]
    keys = jax.random.split(key, len(layer_dims))
    for k, (fi, fo) in zip(keys, layer_dims):
        w, b = linear(k, fi, fo)
        params.append(w)
        params.append(b)
    return params


# ---------------------------------------------------------------------------
# Pure-JAX f32 reference (mirrors the PyTorch forward exactly)
# ---------------------------------------------------------------------------
def _bn_train(x, gamma, beta):
    mean = jnp.mean(x, axis=0, keepdims=True)
    var = jnp.mean(jnp.square(x - mean), axis=0, keepdims=True)
    return gamma * (x - mean) * jax.lax.rsqrt(var + EPS) + beta


def reference_forward(s, params):
    (g_self, b_self, g_other, b_other, g_deck, b_deck, g_uni, b_uni, g_hist, b_hist,
     w1s, c1s, w2s, c2s, w1o, c1o, w2o, c2o, w1d, c1d, w2d, c2d,
     w1h, c1h, w2h, c2h, w1c, c1c, w2c, c2c) = params

    s_self, s_other, s_deck, s_unique, s_hist = jnp.split(s, [33, 66, 177, 184], axis=1)

    o_self = jnp.tanh(_bn_train(s_self, g_self, b_self) @ w1s + c1s)
    o_self = jnp.tanh(o_self @ w2s + c2s)

    o_other = jnp.tanh(_bn_train(s_other, g_other, b_other) @ w1o + c1o)
    o_other = jnp.tanh(o_other @ w2o + c2o)

    o_deck = jnp.tanh(_bn_train(s_deck, g_deck, b_deck) @ w1d + c1d)
    o_deck = jnp.tanh(o_deck @ w2d + c2d)

    o_unique = _bn_train(s_unique, g_uni, b_uni)

    o_hist = _bn_train(s_hist, g_hist, b_hist) @ w1h + c1h
    o_hist = o_hist @ w2h + c2h

    cat = jnp.concatenate([o_self, o_other, o_deck, o_unique, o_hist], axis=1)
    return (cat @ w1c + c1c) @ w2c + c2c


# ---------------------------------------------------------------------------
if __name__ == "__main__":
    key = jax.random.PRNGKey(0)
    k_s, k_p, k_s2 = jax.random.split(key, 3)
    params = init_params(k_p)

    # bf16 matmul operands (f32 accumulation) per the perf review -> tolerance
    # loosened from 1e-3 to 2e-2 against the pure-f32 reference.
    ATOL = RTOL = 2e-2

    # small batch: single-tile path
    batch = 8
    s = jax.random.normal(k_s, (batch, STATE_DIM), jnp.float32)
    out = jax.block_until_ready(estimator_forward(s, params))
    ref = reference_forward(s, params)
    assert out.shape == (batch, NUM_ACTIONS), out.shape
    assert jnp.allclose(out, ref, atol=ATOL, rtol=RTOL), (out, ref)

    # larger batch: exercises the gridded (parallel) batch-tile + padding path
    batch2 = 520
    s2 = jax.random.normal(k_s2, (batch2, STATE_DIM), jnp.float32)
    out2 = jax.block_until_ready(estimator_forward(s2, params))
    ref2 = reference_forward(s2, params)
    assert out2.shape == (batch2, NUM_ACTIONS), out2.shape
    assert jnp.allclose(out2, ref2, atol=ATOL, rtol=RTOL), (out2, ref2)

    print("KERNEL_OK")
</pallas_src>

<mosaic_0001>
module attributes {stable_mosaic.version = 11 : i64} {
  func.func @estimator_kernel(%arg0: i32, %arg1: memref<8x284xbf16, #tpu.memory_space<vmem>>, %arg2: memref<284x256xbf16, #tpu.memory_space<vmem>>, %arg3: memref<1x256xf32, #tpu.memory_space<vmem>>, %arg4: memref<256x128xbf16, #tpu.memory_space<vmem>>, %arg5: memref<1x128xf32, #tpu.memory_space<vmem>>, %arg6: memref<128x64xbf16, #tpu.memory_space<vmem>>, %arg7: memref<284x64xbf16, #tpu.memory_space<vmem>>, %arg8: memref<1x64xf32, #tpu.memory_space<vmem>>, %arg9: memref<64x128xbf16, #tpu.memory_space<vmem>>, %arg10: memref<1x128xf32, #tpu.memory_space<vmem>>, %arg11: memref<8x128xf32, #tpu.memory_space<vmem>>) attributes {dimension_semantics = [#tpu.dimension_semantics<parallel>], iteration_bounds = array<i64: 1>, scalar_prefetch = 0 : i64, scratch_operands = 0 : i64, tpu.core_type = #tpu.core_type<tc>, window_params = [{transform_indices = @transform_0, window_bounds = array<i64: 8, 284>}, {pipeline_mode = #tpu.pipeline_mode<synchronous>, transform_indices = @transform_1, window_bounds = array<i64: 284, 256>}, {pipeline_mode = #tpu.pipeline_mode<synchronous>, transform_indices = @transform_2, window_bounds = array<i64: 1, 256>}, {pipeline_mode = #tpu.pipeline_mode<synchronous>, transform_indices = @transform_3, window_bounds = array<i64: 256, 128>}, {pipeline_mode = #tpu.pipeline_mode<synchronous>, transform_indices = @transform_4, window_bounds = array<i64: 1, 128>}, {pipeline_mode = #tpu.pipeline_mode<synchronous>, transform_indices = @transform_5, window_bounds = array<i64: 128, 64>}, {pipeline_mode = #tpu.pipeline_mode<synchronous>, transform_indices = @transform_6, window_bounds = array<i64: 284, 64>}, {pipeline_mode = #tpu.pipeline_mode<synchronous>, transform_indices = @transform_7, window_bounds = array<i64: 1, 64>}, {pipeline_mode = #tpu.pipeline_mode<synchronous>, transform_indices = @transform_8, window_bounds = array<i64: 64, 128>}, {pipeline_mode = #tpu.pipeline_mode<synchronous>, transform_indices = @transform_9, window_bounds = array<i64: 1, 128>}, {transform_indices = @transform_10, window_bounds = array<i64: 8, 128>}]} {
    %c0 = arith.constant 0 : index
    %c0_0 = arith.constant 0 : index
    %0 = vector.load %arg1[%c0, %c0_0] : memref<8x284xbf16, #tpu.memory_space<vmem>>, vector<8x284xbf16>
    %c0_1 = arith.constant 0 : index
    %c0_2 = arith.constant 0 : index
    %1 = vector.load %arg2[%c0_1, %c0_2] : memref<284x256xbf16, #tpu.memory_space<vmem>>, vector<284x256xbf16>
    %cst = arith.constant dense<0.000000e+00> : vector<8x256xf32>
    %2 = tpu.matmul %0, %1, %cst {dimension_numbers = #tpu.dot_dimension_numbers<[1], [0], [0], [1], [0, 0, 1, 1], [], []>} : vector<8x284xbf16>, vector<284x256xbf16>, vector<8x256xf32> -> vector<8x256xf32>
    %c0_3 = arith.constant 0 : index
    %c0_4 = arith.constant 0 : index
    %3 = vector.load %arg3[%c0_3, %c0_4] : memref<1x256xf32, #tpu.memory_space<vmem>>, vector<1x256xf32>
    %4 = vector.broadcast %3 : vector<1x256xf32> to vector<8x256xf32>
    %5 = arith.addf %2, %4 : vector<8x256xf32>
    %6 = tpu.iota {dimensions = array<i32: 1>} : vector<8x256xi32>
    %c192_i32 = arith.constant 192 : i32
    %7 = vector.broadcast %c192_i32 : i32 to vector<8x256xi32>
    %8 = arith.cmpi slt, %6, %7 : vector<8x256xi32>
    %9 = math.tanh %5 : vector<8x256xf32>
    %10 = arith.select %8, %9, %5 : vector<8x256xi1>, vector<8x256xf32>
    %11 = arith.truncf %10 : vector<8x256xf32> to vector<8x256xbf16>
    %c0_5 = arith.constant 0 : index
    %c0_6 = arith.constant 0 : index
    %12 = vector.load %arg4[%c0_5, %c0_6] : memref<256x128xbf16, #tpu.memory_space<vmem>>, vector<256x128xbf16>
    %cst_7 = arith.constant dense<0.000000e+00> : vector<8x128xf32>
    %13 = tpu.matmul %11, %12, %cst_7 {dimension_numbers = #tpu.dot_dimension_numbers<[1], [0], [0], [1], [0, 0, 1, 1], [], []>} : vector<8x256xbf16>, vector<256x128xbf16>, vector<8x128xf32> -> vector<8x128xf32>
    %c0_8 = arith.constant 0 : index
    %c0_9 = arith.constant 0 : index
    %14 = vector.load %arg5[%c0_8, %c0_9] : memref<1x128xf32, #tpu.memory_space<vmem>>, vector<1x128xf32>
    %15 = vector.broadcast %14 : vector<1x128xf32> to vector<8x128xf32>
    %16 = arith.addf %13, %15 : vector<8x128xf32>
    %17 = tpu.iota {dimensions = array<i32: 1>} : vector<8x128xi32>
    %c96_i32 = arith.constant 96 : i32
    %18 = vector.broadcast %c96_i32 : i32 to vector<8x128xi32>
    %19 = arith.cmpi slt, %17, %18 : vector<8x128xi32>
    %20 = math.tanh %16 : vector<8x128xf32>
    %21 = arith.select %19, %20, %16 : vector<8x128xi1>, vector<8x128xf32>
    %22 = arith.truncf %21 : vector<8x128xf32> to vector<8x128xbf16>
    %c0_10 = arith.constant 0 : index
    %c0_11 = arith.constant 0 : index
    %23 = vector.load %arg6[%c0_10, %c0_11] : memref<128x64xbf16, #tpu.memory_space<vmem>>, vector<128x64xbf16>
    %cst_12 = arith.constant dense<0.000000e+00> : vector<8x64xf32>
    %24 = tpu.matmul %22, %23, %cst_12 {dimension_numbers = #tpu.dot_dimension_numbers<[1], [0], [0], [1], [0, 0, 1, 1], [], []>} : vector<8x128xbf16>, vector<128x64xbf16>, vector<8x64xf32> -> vector<8x64xf32>
    %c0_13 = arith.constant 0 : index
    %c0_14 = arith.constant 0 : index
    %25 = vector.load %arg7[%c0_13, %c0_14] : memref<284x64xbf16, #tpu.memory_space<vmem>>, vector<284x64xbf16>
    %cst_15 = arith.constant dense<0.000000e+00> : vector<8x64xf32>
    %26 = tpu.matmul %0, %25, %cst_15 {dimension_numbers = #tpu.dot_dimension_numbers<[1], [0], [0], [1], [0, 0, 1, 1], [], []>} : vector<8x284xbf16>, vector<284x64xbf16>, vector<8x64xf32> -> vector<8x64xf32>
    %27 = arith.addf %24, %26 : vector<8x64xf32>
    %c0_16 = arith.constant 0 : index
    %c0_17 = arith.constant 0 : index
    %28 = vector.load %arg8[%c0_16, %c0_17] : memref<1x64xf32, #tpu.memory_space<vmem>>, vector<1x64xf32>
    %29 = vector.broadcast %28 : vector<1x64xf32> to vector<8x64xf32>
    %30 = arith.addf %27, %29 : vector<8x64xf32>
    %31 = arith.truncf %30 : vector<8x64xf32> to vector<8x64xbf16>
    %c0_18 = arith.constant 0 : index
    %c0_19 = arith.constant 0 : index
    %32 = vector.load %arg9[%c0_18, %c0_19] : memref<64x128xbf16, #tpu.memory_space<vmem>>, vector<64x128xbf16>
    %cst_20 = arith.constant dense<0.000000e+00> : vector<8x128xf32>
    %33 = tpu.matmul %31, %32, %cst_20 {dimension_numbers = #tpu.dot_dimension_numbers<[1], [0], [0], [1], [0, 0, 1, 1], [], []>} : vector<8x64xbf16>, vector<64x128xbf16>, vector<8x128xf32> -> vector<8x128xf32>
    %c0_21 = arith.constant 0 : index
    %c0_22 = arith.constant 0 : index
    %34 = vector.load %arg10[%c0_21, %c0_22] : memref<1x128xf32, #tpu.memory_space<vmem>>, vector<1x128xf32>
    %35 = vector.broadcast %34 : vector<1x128xf32> to vector<8x128xf32>
    %36 = arith.addf %33, %35 : vector<8x128xf32>
    %c0_23 = arith.constant 0 : index
    %c0_24 = arith.constant 0 : index
    %37 = vector.load %arg11[%c0_23, %c0_24] : memref<8x128xf32, #tpu.memory_space<vmem>>, vector<8x128xf32>
    tpu.vector_store %arg11[%c0_23, %c0_24], %36 {strides = array<i32>} : memref<8x128xf32, #tpu.memory_space<vmem>>, vector<8x128xf32>,
    return
  }
  func.func @transform_0(%arg0: i32) -> (i32, i32) {
    %c0_i32 = arith.constant 0 : i32
    %c0_i32_0 = arith.constant 0 : i32
    return %arg0, %c0_i32 : i32, i32
  }
  func.func @transform_1(%arg0: i32) -> (i32, i32) {
    %c0_i32 = arith.constant 0 : i32
    %c0_i32_0 = arith.constant 0 : i32
    %c0_i32_1 = arith.constant 0 : i32
    return %c0_i32, %c0_i32_0 : i32, i32
  }
  func.func @transform_2(%arg0: i32) -> (i32, i32) {
    %c0_i32 = arith.constant 0 : i32
    %c0_i32_0 = arith.constant 0 : i32
    %c0_i32_1 = arith.constant 0 : i32
    return %c0_i32, %c0_i32_0 : i32, i32
  }
  func.func @transform_3(%arg0: i32) -> (i32, i32) {
    %c0_i32 = arith.constant 0 : i32
    %c0_i32_0 = arith.constant 0 : i32
    %c0_i32_1 = arith.constant 0 : i32
    return %c0_i32, %c0_i32_0 : i32, i32
  }
  func.func @transform_4(%arg0: i32) -> (i32, i32) {
    %c0_i32 = arith.constant 0 : i32
    %c0_i32_0 = arith.constant 0 : i32
    %c0_i32_1 = arith.constant 0 : i32
    return %c0_i32, %c0_i32_0 : i32, i32
  }
  func.func @transform_5(%arg0: i32) -> (i32, i32) {
    %c0_i32 = arith.constant 0 : i32
    %c0_i32_0 = arith.constant 0 : i32
    %c0_i32_1 = arith.constant 0 : i32
    return %c0_i32, %c0_i32_0 : i32, i32
  }
  func.func @transform_6(%arg0: i32) -> (i32, i32) {
    %c0_i32 = arith.constant 0 : i32
    %c0_i32_0 = arith.constant 0 : i32
    %c0_i32_1 = arith.constant 0 : i32
    return %c0_i32, %c0_i32_0 : i32, i32
  }
  func.func @transform_7(%arg0: i32) -> (i32, i32) {
    %c0_i32 = arith.constant 0 : i32
    %c0_i32_0 = arith.constant 0 : i32
    %c0_i32_1 = arith.constant 0 : i32
    return %c0_i32, %c0_i32_0 : i32, i32
  }
  func.func @transform_8(%arg0: i32) -> (i32, i32) {
    %c0_i32 = arith.constant 0 : i32
    %c0_i32_0 = arith.constant 0 : i32
    %c0_i32_1 = arith.constant 0 : i32
    return %c0_i32, %c0_i32_0 : i32, i32
  }
  func.func @transform_9(%arg0: i32) -> (i32, i32) {
    %c0_i32 = arith.constant 0 : i32
    %c0_i32_0 = arith.constant 0 : i32
    %c0_i32_1 = arith.constant 0 : i32
    return %c0_i32, %c0_i32_0 : i32, i32
  }
  func.func @transform_10(%arg0: i32) -> (i32, i32) {
    %c0_i32 = arith.constant 0 : i32
    %c0_i32_0 = arith.constant 0 : i32
    return %arg0, %c0_i32 : i32, i32
  }
}

</mosaic_0001>

<llo_original>
// kernel: estimator_forward.1
$region0: #{estimator_forward.1}
  #allocation0 [shape = 'u32[]', space=smem, size = 0x4, offset = 0x4, fixed_abs, tag = 'smem constant byte address 0x4 - core index']
  #allocation1 [shape = 'u32[144,128]{1,0:T(1,128)}', space=vmem, size = 0x12000, scoped, tag = 'internal scratch']
  %s0 = inlined_call_operand.vmem [shape: bf16[8,284], index: 0, kind: input, shape index: {}]
  %s1 = inlined_call_operand.vmem [shape: bf16[284,256], index: 1, kind: input, shape index: {}]
  %s2 = inlined_call_operand.vmem [shape: f32[1,256], index: 2, kind: input, shape index: {}]
  %s3 = inlined_call_operand.vmem [shape: bf16[256,128], index: 3, kind: input, shape index: {}]
  %s4 = inlined_call_operand.vmem [shape: f32[1,128], index: 4, kind: input, shape index: {}]
  %s5 = inlined_call_operand.vmem [shape: bf16[128,64], index: 5, kind: input, shape index: {}]
  %s6 = inlined_call_operand.vmem [shape: bf16[284,64], index: 6, kind: input, shape index: {}]
  %s7 = inlined_call_operand.vmem [shape: f32[1,64], index: 7, kind: input, shape index: {}]
  %s8 = inlined_call_operand.vmem [shape: bf16[64,128], index: 8, kind: input, shape index: {}]
  %s9 = inlined_call_operand.vmem [shape: f32[1,128], index: 9, kind: input, shape index: {}]
  %s10 = inlined_call_operand.vmem [shape: f32[8,128], index: 10, kind: output, shape index: {}]
  %s11 = sld [smem:[#allocation0]]
  $region50: #{estimator_forward.1} parent=0
    _
  %s13 = ssub.s32 1, %s11
  %s14 = scalar_select 0, %s13, %s11
  // Predicated region
  $region2: #{estimator_forward.1} parent=0 // pred_check
    _
  $region3: #{estimator_forward.1} parent=0 // pred_check_branch
    %16 = sbr.rel (0) target = $region5
  $region4: #{estimator_forward.1} parent=0 // pred_region
    _
  $region5: #{estimator_forward.1} parent=0 // pred_fallthru
    _
  // Predicated region
  $region6: #{estimator_forward.1} parent=0 // pred_check
    _
  $region7: #{estimator_forward.1} parent=0 // pred_check_branch
    %18 = sbr.rel (0) target = $region9
  $region8: #{estimator_forward.1} parent=0 // pred_region
    _
  $region9: #{estimator_forward.1} parent=0 // pred_fallthru
    _
  // Predicated region
  $region10: #{estimator_forward.1} parent=0 // pred_check
    _
  $region11: #{estimator_forward.1} parent=0 // pred_check_branch
    %20 = sbr.rel (0) target = $region13
  $region12: #{estimator_forward.1} parent=0 // pred_region
    _
  $region13: #{estimator_forward.1} parent=0 // pred_fallthru
    _
  // Predicated region
  $region14: #{estimator_forward.1} parent=0 // pred_check
    _
  $region15: #{estimator_forward.1} parent=0 // pred_check_branch
    %22 = sbr.rel (0) target = $region17
  $region16: #{estimator_forward.1} parent=0 // pred_region
    _
  $region17: #{estimator_forward.1} parent=0 // pred_fallthru
    _
  // Predicated region
  $region18: #{estimator_forward.1} parent=0 // pred_check
    _
  $region19: #{estimator_forward.1} parent=0 // pred_check_branch
    %24 = sbr.rel (0) target = $region21
  $region20: #{estimator_forward.1} parent=0 // pred_region
    _
  $region21: #{estimator_forward.1} parent=0 // pred_fallthru
    _
  // Predicated region
  $region22: #{estimator_forward.1} parent=0 // pred_check
    _
  $region23: #{estimator_forward.1} parent=0 // pred_check_branch
    %26 = sbr.rel (0) target = $region25
  $region24: #{estimator_forward.1} parent=0 // pred_region
    _
  $region25: #{estimator_forward.1} parent=0 // pred_fallthru
    _
  // Predicated region
  $region26: #{estimator_forward.1} parent=0 // pred_check
    _
  $region27: #{estimator_forward.1} parent=0 // pred_check_branch
    %28 = sbr.rel (0) target = $region29
  $region28: #{estimator_forward.1} parent=0 // pred_region
    _
  $region29: #{estimator_forward.1} parent=0 // pred_fallthru
    _
  // Predicated region
  $region30: #{estimator_forward.1} parent=0 // pred_check
    _
  $region31: #{estimator_forward.1} parent=0 // pred_check_branch
    %30 = sbr.rel (0) target = $region33
  $region32: #{estimator_forward.1} parent=0 // pred_region
    _
  $region33: #{estimator_forward.1} parent=0 // pred_fallthru
    _
  // Predicated region
  $region34: #{estimator_forward.1} parent=0 // pred_check
    _
  $region35: #{estimator_forward.1} parent=0 // pred_check_branch
    %32 = sbr.rel (0) target = $region37
  $region36: #{estimator_forward.1} parent=0 // pred_region
    _
  $region37: #{estimator_forward.1} parent=0 // pred_fallthru
    _
  // Predicated region
  $region38: #{estimator_forward.1} parent=0 // pred_check
    _
  $region39: #{estimator_forward.1} parent=0 // pred_check_branch
    %34 = sbr.rel (0) target = $region41
  $region40: #{estimator_forward.1} parent=0 // pred_region
    _
  $region41: #{estimator_forward.1} parent=0 // pred_fallthru
    _
  %v36 = vld [vmem:[%s0] sm:$0xff]
  %v37 = vld [vmem:[%s0 + $0x8] sm:$0xf]
  %v38 = vld [vmem:[%s1] sm:$0xff]
  %v39 = vld [vmem:[%s1 + $0x8] sm:$0xff]
  %v40 = vld [vmem:[%s1 + $0x10] sm:$0xff]
  %v41 = vld [vmem:[%s1 + $0x18] sm:$0xff]
  %v42 = vld [vmem:[%s1 + $0x20] sm:$0xff]
  %v43 = vld [vmem:[%s1 + $0x28] sm:$0xff]
  %v44 = vld [vmem:[%s1 + $0x30] sm:$0xff]
  %v45 = vld [vmem:[%s1 + $0x38] sm:$0xff]
  %v46 = vld [vmem:[%s1 + $0x40] sm:$0xff]
  %v47 = vld [vmem:[%s1 + $0x48] sm:$0xff]
  %v48 = vld [vmem:[%s1 + $0x50] sm:$0xff]
  %v49 = vld [vmem:[%s1 + $0x58] sm:$0xff]
  %v50 = vld [vmem:[%s1 + $0x60] sm:$0xff]
  %v51 = vld [vmem:[%s1 + $0x68] sm:$0xff]
  %v52 = vld [vmem:[%s1 + $0x70] sm:$0xff]
  %v53 = vld [vmem:[%s1 + $0x78] sm:$0xff]
  %v54 = vld [vmem:[%s1 + $0x80] sm:$0xff]
  %v55 = vld [vmem:[%s1 + $0x88] sm:$0xff]
  %v56 = vld [vmem:[%s1 + $0x90] sm:$0xff]
  %v57 = vld [vmem:[%s1 + $0x98] sm:$0xff]
  %v58 = vld [vmem:[%s1 + $0xa0] sm:$0xff]
  %v59 = vld [vmem:[%s1 + $0xa8] sm:$0xff]
  %v60 = vld [vmem:[%s1 + $0xb0] sm:$0xff]
  %v61 = vld [vmem:[%s1 + $0xb8] sm:$0xff]
  %v62 = vld [vmem:[%s1 + $0xc0] sm:$0xff]
  %v63 = vld [vmem:[%s1 + $0xc8] sm:$0xff]
  %v64 = vld [vmem:[%s1 + $0xd0] sm:$0xff]
  %v65 = vld [vmem:[%s1 + $0xd8] sm:$0xff]
  %v66 = vld [vmem:[%s1 + $0xe0] sm:$0xff]
  %v67 = vld [vmem:[%s1 + $0xe8] sm:$0xff]
  %v68 = vld [vmem:[%s1 + $0xf0] sm:$0xff]
  %v69 = vld [vmem:[%s1 + $0xf8] sm:$0xff]
  %v70 = vld [vmem:[%s1 + $0x100] sm:$0xff]
  %v71 = vld [vmem:[%s1 + $0x108] sm:$0xff]
  %v72 = vld [vmem:[%s1 + $0x110] sm:$0xff]
  %v73 = vld [vmem:[%s1 + $0x118] sm:$0x33]
  %v74 = vld [vmem:[%s2] sm:$0x3]
  %v76 = vlaneseq
  %v77 = vshrl.u32 %v76, 7
  %v78 = vsub.s32 0, %v77
  %v79 = vrot.slane %v74, %v78
  %v80 = vlaneseq
  %v81 = vshrl.u32 %v80, 7
  %v82 = vsub.s32 1, %v81
  %v83 = vrot.slane %v74, %v82
  %v88 = vunpack.c.l.b16 %v36
  %v89 = vunpack.c.h.b16 %v36
  %v90 = vunpack.c.l.b16 %v37
  %v91 = vpack.c.b16 %v88, %v88
  %v92 = vpack.c.b16 %v89, %v89
  %v93 = vpack.c.b16 %v90, %v90
  %v132 = vunpack.c.l.b16 %v38
  %v133 = vunpack.c.h.b16 %v38
  %v134 = vunpack.c.l.b16 %v39
  %v135 = vunpack.c.h.b16 %v39
  %v136 = vunpack.c.l.b16 %v40
  %v137 = vunpack.c.h.b16 %v40
  %v138 = vunpack.c.l.b16 %v41
  %v139 = vunpack.c.h.b16 %v41
  %v140 = vunpack.c.l.b16 %v42
  %v141 = vunpack.c.h.b16 %v42
  %v142 = vunpack.c.l.b16 %v43
  %v143 = vunpack.c.h.b16 %v43
  %v144 = vunpack.c.l.b16 %v44
  %v145 = vunpack.c.h.b16 %v44
  %v146 = vunpack.c.l.b16 %v45
  %v147 = vunpack.c.h.b16 %v45
  %v148 = vunpack.c.l.b16 %v46
  %v149 = vunpack.c.h.b16 %v46
  %v150 = vunpack.c.l.b16 %v47
  %v151 = vunpack.c.h.b16 %v47
  %v152 = vunpack.c.l.b16 %v48
  %v153 = vunpack.c.h.b16 %v48
  %v154 = vunpack.c.l.b16 %v49
  %v155 = vunpack.c.h.b16 %v49
  %v156 = vunpack.c.l.b16 %v50
  %v157 = vunpack.c.h.b16 %v50
  %v158 = vunpack.c.l.b16 %v51
  %v159 = vunpack.c.h.b16 %v51
  %v160 = vunpack.c.l.b16 %v52
  %v161 = vunpack.c.h.b16 %v52
  %v162 = vunpack.c.l.b16 %v53
  %v163 = vunpack.c.h.b16 %v53
  %v164 = vunpack.c.l.b16 %v54
  %v165 = vunpack.c.h.b16 %v54
  %v166 = vunpack.c.l.b16 %v55
  %v167 = vunpack.c.h.b16 %v55
  %v168 = vunpack.c.l.b16 %v56
  %v169 = vunpack.c.h.b16 %v56
  %v170 = vunpack.c.l.b16 %v57
  %v171 = vunpack.c.h.b16 %v57
  %v172 = vunpack.c.l.b16 %v58
  %v173 = vunpack.c.h.b16 %v58
  %v174 = vunpack.c.l.b16 %v59
  %v175 = vunpack.c.h.b16 %v59
  %v176 = vunpack.c.l.b16 %v60
  %v177 = vunpack.c.h.b16 %v60
  %v178 = vunpack.c.l.b16 %v61
  %v179 = vunpack.c.h.b16 %v61
  %v180 = vunpack.c.l.b16 %v62
  %v181 = vunpack.c.h.b16 %v62
  %v182 = vunpack.c.l.b16 %v63
  %v183 = vunpack.c.h.b16 %v63
  %v184 = vunpack.c.l.b16 %v64
  %v185 = vunpack.c.h.b16 %v64
  %v186 = vunpack.c.l.b16 %v65
  %v187 = vunpack.c.h.b16 %v65
  %v188 = vunpack.c.l.b16 %v66
  %v189 = vunpack.c.h.b16 %v66
  %v190 = vunpack.c.l.b16 %v67
  %v191 = vunpack.c.h.b16 %v67
  %v192 = vunpack.c.l.b16 %v68
  %v193 = vunpack.c.h.b16 %v68
  %v194 = vunpack.c.l.b16 %v69
  %v195 = vunpack.c.h.b16 %v69
  %v196 = vunpack.c.l.b16 %v70
  %v197 = vunpack.c.h.b16 %v70
  %v198 = vunpack.c.l.b16 %v71
  %v199 = vunpack.c.h.b16 %v71
  %v200 = vunpack.c.l.b16 %v72
  %v201 = vunpack.c.h.b16 %v72
  %v202 = vunpack.c.l.b16 %v73
  %v203 = vunpack.c.h.b16 %v73
  %v204 = vpack.c.b16 %v134, %v132
  %v205 = vpack.c.b16 %v135, %v133
  %v206 = vpack.c.b16 %v138, %v136
  %v207 = vpack.c.b16 %v139, %v137
  %v208 = vpack.c.b16 %v142, %v140
  %v209 = vpack.c.b16 %v143, %v141
  %v210 = vpack.c.b16 %v146, %v144
  %v211 = vpack.c.b16 %v147, %v145
  %v212 = vpack.c.b16 %v150, %v148
  %v213 = vpack.c.b16 %v151, %v149
  %v214 = vpack.c.b16 %v154, %v152
  %v215 = vpack.c.b16 %v155, %v153
  %v216 = vpack.c.b16 %v158, %v156
  %v217 = vpack.c.b16 %v159, %v157
  %v218 = vpack.c.b16 %v162, %v160
  %v219 = vpack.c.b16 %v163, %v161
  %v220 = vpack.c.b16 %v166, %v164
  %v221 = vpack.c.b16 %v167, %v165
  %v222 = vpack.c.b16 %v170, %v168
  %v223 = vpack.c.b16 %v171, %v169
  %v224 = vpack.c.b16 %v174, %v172
  %v225 = vpack.c.b16 %v175, %v173
  %v226 = vpack.c.b16 %v178, %v176
  %v227 = vpack.c.b16 %v179, %v177
  %v228 = vpack.c.b16 %v182, %v180
  %v229 = vpack.c.b16 %v183, %v181
  %v230 = vpack.c.b16 %v186, %v184
  %v231 = vpack.c.b16 %v187, %v185
  %v232 = vpack.c.b16 %v190, %v188
  %v233 = vpack.c.b16 %v191, %v189
  %v234 = vpack.c.b16 %v194, %v192
  %v235 = vpack.c.b16 %v195, %v193
  %v236 = vpack.c.b16 %v198, %v196
  %v237 = vpack.c.b16 %v199, %v197
  %v238 = vpack.c.b16 %v202, %v200
  %v239 = vpack.c.b16 %v203, %v201
  %vm274 = vcmask 228352
  %v276 = vsel %vm274, %v93, 0
  %vm278 = vcmask 1045504
  %v280 = vsel %vm278, %v238, 0
  %v283 = vsel %vm278, %v239, 0
  %285 = vmatprep.subr.bf16.mxu0 %v205
  %286 = vmatpush1.bf16.msra.mxu0 %v204
  %287 = vmatprep.subr.bf16.mxu0 %v207
  %288 = vmatpush1.bf16.msra.mxu0 %v206
  %289 = vmatprep.subr.bf16.mxu0 %v209
  %290 = vmatpush1.bf16.msra.mxu0 %v208
  %291 = vmatprep.subr.bf16.mxu0 %v211
  %292 = vmatpush1.bf16.msra.mxu0 %v210
  %293 = vmatprep.subr.bf16.mxu0 %v213
  %294 = vmatpush1.bf16.msra.mxu0 %v212
  %295 = vmatprep.subr.bf16.mxu0 %v215
  %296 = vmatpush1.bf16.msra.mxu0 %v214
  %297 = vmatprep.subr.bf16.mxu0 %v217
  %298 = vmatpush1.bf16.msra.mxu0 %v216
  %299 = vmatprep.subr.bf16.mxu0 %v219
  %300 = vmatpush1.bf16.msra.mxu0 %v218
  %301 = vmatprep.subr.bf16.mxu0 %v221
  %302 = vmatpush1.bf16.msra.mxu0 %v220
  %303 = vmatprep.subr.bf16.mxu0 %v223
  %304 = vmatpush1.bf16.msra.mxu0 %v222
  %305 = vmatprep.subr.bf16.mxu0 %v225
  %306 = vmatpush1.bf16.msra.mxu0 %v224
  %307 = vmatprep.subr.bf16.mxu0 %v227
  %308 = vmatpush1.bf16.msra.mxu0 %v226
  %309 = vmatprep.subr.bf16.mxu0 %v229
  %310 = vmatpush1.bf16.msra.mxu0 %v228
  %311 = vmatprep.subr.bf16.mxu0 %v231
  %312 = vmatpush1.bf16.msra.mxu0 %v230
  %313 = vmatprep.subr.bf16.mxu0 %v233
  %314 = vmatpush1.bf16.msra.mxu0 %v232
  %315 = vmatprep.subr.bf16.mxu0 %v235
  %316 = vmatpush1.bf16.msra.mxu0 %v234
  %317 = vmatprep.mubr.bf16.mxu0 %v92
  %318 = vmatmul.mubr.bf16.gmra.mrb[0].mxu0 %v91
  %v319 = vpop.f32.mrb[0].mxu0
  %v320 = vadd.f32 %v79, %v319
  %v321 = vpop.f32.mrb[0].mxu0
  %v322 = vadd.f32 %v83, %v321
  %v323 = vpop.f32.mrb[0].mxu0
  %v324 = vpop.f32.mrb[0].mxu0
  %325 = vdwg.mxu0
  %326 = vmatprep.subr.bf16.mxu0 %v237
  %327 = vmatpush1.bf16.msra.mxu0 %v236
  %328 = vmatprep.subr.bf16.mxu0 %v283
  %329 = vmatpush1.bf16.msra.mxu0 %v280
  %330 = vmatprep.subr.bf16.mxu0 0
  %331 = vmatpush1.bf16.msra.mxu0 0
  %332 = vmatprep.subr.bf16.mxu0 0
  %333 = vmatpush1.bf16.msra.mxu0 0
  %334 = vmatprep.subr.bf16.mxu0 0
  %335 = vmatpush1.bf16.msra.mxu0 0
  %336 = vmatprep.subr.bf16.mxu0 0
  %337 = vmatpush1.bf16.msra.mxu0 0
  %338 = vmatprep.subr.bf16.mxu0 0
  %339 = vmatpush1.bf16.msra.mxu0 0
  %340 = vmatprep.subr.bf16.mxu0 0
  %341 = vmatpush1.bf16.msra.mxu0 0
  %342 = vmatprep.subr.bf16.mxu0 0
  %343 = vmatpush1.bf16.msra.mxu0 0
  %344 = vmatprep.subr.bf16.mxu0 0
  %345 = vmatpush1.bf16.msra.mxu0 0
  %346 = vmatprep.subr.bf16.mxu0 0
  %347 = vmatpush1.bf16.msra.mxu0 0
  %348 = vmatprep.subr.bf16.mxu0 0
  %349 = vmatpush1.bf16.msra.mxu0 0
  %350 = vmatprep.subr.bf16.mxu0 0
  %351 = vmatpush1.bf16.msra.mxu0 0
  %352 = vmatprep.subr.bf16.mxu0 0
  %353 = vmatpush1.bf16.msra.mxu0 0
  %354 = vmatprep.subr.bf16.mxu0 0
  %355 = vmatpush1.bf16.msra.mxu0 0
  %356 = vmatprep.subr.bf16.mxu0 0
  %357 = vmatpush1.bf16.msra.mxu0 0
  %358 = vmatprep.mubr.bf16.mxu0 0
  %359 = vmatmul.mubr.bf16.gmra.mrb[0].mxu0 %v276
  %v360 = vpop.f32.mrb[0].mxu0
  %v361 = vadd.f32 %v320, %v360
  %v362 = vpop.f32.mrb[0].mxu0
  %v363 = vadd.f32 %v322, %v362
  %v364 = vpop.f32.mrb[0].mxu0
  %v365 = vpop.f32.mrb[0].mxu0
  %366 = vdwg.mxu0
  %v367 = vlaneseq
  %v368 = vand.u32 %v367, 127
  %v369 = vadd.s32 %v368, 128
  %vm370 = vcmp.lt.s32.totalorder %v368, 192
  %vm371 = vcmp.lt.s32.totalorder %v369, 192
  %v372 = vtanh.pop %v361
  %v373 = vtanh.pop %v363
  %v374 = vsel %vm370, %v372, %v361
  %v375 = vsel %vm371, %v373, %v363
  %v376 = vpack.c.bf16 %v374, %v374
  %v377 = vpack.c.bf16 %v375, %v375
  %v378 = vld [vmem:[%s3] sm:$0xf]
  %v379 = vld [vmem:[%s3 + $0x4] sm:$0xf]
  %v380 = vld [vmem:[%s3 + $0x8] sm:$0xf]
  %v381 = vld [vmem:[%s3 + $0xc] sm:$0xf]
  %v382 = vld [vmem:[%s3 + $0x10] sm:$0xf]
  %v383 = vld [vmem:[%s3 + $0x14] sm:$0xf]
  %v384 = vld [vmem:[%s3 + $0x18] sm:$0xf]
  %v385 = vld [vmem:[%s3 + $0x1c] sm:$0xf]
  %v386 = vld [vmem:[%s3 + $0x20] sm:$0xf]
  %v387 = vld [vmem:[%s3 + $0x24] sm:$0xf]
  %v388 = vld [vmem:[%s3 + $0x28] sm:$0xf]
  %v389 = vld [vmem:[%s3 + $0x2c] sm:$0xf]
  %v390 = vld [vmem:[%s3 + $0x30] sm:$0xf]
  %v391 = vld [vmem:[%s3 + $0x34] sm:$0xf]
  %v392 = vld [vmem:[%s3 + $0x38] sm:$0xf]
  %v393 = vld [vmem:[%s3 + $0x3c] sm:$0xf]
  %v394 = vld [vmem:[%s3 + $0x40] sm:$0xf]
  %v395 = vld [vmem:[%s3 + $0x44] sm:$0xf]
  %v396 = vld [vmem:[%s3 + $0x48] sm:$0xf]
  %v397 = vld [vmem:[%s3 + $0x4c] sm:$0xf]
  %v398 = vld [vmem:[%s3 + $0x50] sm:$0xf]
  %v399 = vld [vmem:[%s3 + $0x54] sm:$0xf]
  %v400 = vld [vmem:[%s3 + $0x58] sm:$0xf]
  %v401 = vld [vmem:[%s3 + $0x5c] sm:$0xf]
  %v402 = vld [vmem:[%s3 + $0x60] sm:$0xf]
  %v403 = vld [vmem:[%s3 + $0x64] sm:$0xf]
  %v404 = vld [vmem:[%s3 + $0x68] sm:$0xf]
  %v405 = vld [vmem:[%s3 + $0x6c] sm:$0xf]
  %v406 = vld [vmem:[%s3 + $0x70] sm:$0xf]
  %v407 = vld [vmem:[%s3 + $0x74] sm:$0xf]
  %v408 = vld [vmem:[%s3 + $0x78] sm:$0xf]
  %v409 = vld [vmem:[%s3 + $0x7c] sm:$0xf]
  %v410 = vld [vmem:[%s4] sm:$0x1]
  %v412 = vlaneseq
  %v413 = vshrl.u32 %v412, 7
  %v414 = vsub.s32 0, %v413
  %v415 = vrot.slane %v410, %v414
  %v449 = vunpack.c.l.b16 %v378
  %v450 = vunpack.c.l.b16 %v379
  %v451 = vunpack.c.l.b16 %v380
  %v452 = vunpack.c.l.b16 %v381
  %v453 = vunpack.c.l.b16 %v382
  %v454 = vunpack.c.l.b16 %v383
  %v455 = vunpack.c.l.b16 %v384
  %v456 = vunpack.c.l.b16 %v385
  %v457 = vunpack.c.l.b16 %v386
  %v458 = vunpack.c.l.b16 %v387
  %v459 = vunpack.c.l.b16 %v388
  %v460 = vunpack.c.l.b16 %v389
  %v461 = vunpack.c.l.b16 %v390
  %v462 = vunpack.c.l.b16 %v391
  %v463 = vunpack.c.l.b16 %v392
  %v464 = vunpack.c.l.b16 %v393
  %v465 = vunpack.c.l.b16 %v394
  %v466 = vunpack.c.l.b16 %v395
  %v467 = vunpack.c.l.b16 %v396
  %v468 = vunpack.c.l.b16 %v397
  %v469 = vunpack.c.l.b16 %v398
  %v470 = vunpack.c.l.b16 %v399
  %v471 = vunpack.c.l.b16 %v400
  %v472 = vunpack.c.l.b16 %v401
  %v473 = vunpack.c.l.b16 %v402
  %v474 = vunpack.c.l.b16 %v403
  %v475 = vunpack.c.l.b16 %v404
  %v476 = vunpack.c.l.b16 %v405
  %v477 = vunpack.c.l.b16 %v406
  %v478 = vunpack.c.l.b16 %v407
  %v479 = vunpack.c.l.b16 %v408
  %v480 = vunpack.c.l.b16 %v409
  %v481 = vpack.c.b16 %v450, %v449
  %v482 = vpack.c.b16 %v452, %v451
  %v483 = vpack.c.b16 %v454, %v453
  %v484 = vpack.c.b16 %v456, %v455
  %v485 = vpack.c.b16 %v458, %v457
  %v486 = vpack.c.b16 %v460, %v459
  %v487 = vpack.c.b16 %v462, %v461
  %v488 = vpack.c.b16 %v464, %v463
  %v489 = vpack.c.b16 %v466, %v465
  %v490 = vpack.c.b16 %v468, %v467
  %v491 = vpack.c.b16 %v470, %v469
  %v492 = vpack.c.b16 %v472, %v471
  %v493 = vpack.c.b16 %v474, %v473
  %v494 = vpack.c.b16 %v476, %v475
  %v495 = vpack.c.b16 %v478, %v477
  %v496 = vpack.c.b16 %v480, %v479
  %513 = vmatprep.subr.bf16.mxu0 0
  %514 = vmatpush1.bf16.msra.mxu0 %v481
  %515 = vmatprep.subr.bf16.mxu0 0
  %516 = vmatpush1.bf16.msra.mxu0 %v482
  %517 = vmatprep.subr.bf16.mxu0 0
  %518 = vmatpush1.bf16.msra.mxu0 %v483
  %519 = vmatprep.subr.bf16.mxu0 0
  %520 = vmatpush1.bf16.msra.mxu0 %v484
  %521 = vmatprep.subr.bf16.mxu0 0
  %522 = vmatpush1.bf16.msra.mxu0 %v485
  %523 = vmatprep.subr.bf16.mxu0 0
  %524 = vmatpush1.bf16.msra.mxu0 %v486
  %525 = vmatprep.subr.bf16.mxu0 0
  %526 = vmatpush1.bf16.msra.mxu0 %v487
  %527 = vmatprep.subr.bf16.mxu0 0
  %528 = vmatpush1.bf16.msra.mxu0 %v488
  %529 = vmatprep.subr.bf16.mxu0 0
  %530 = vmatpush1.bf16.msra.mxu0 %v489
  %531 = vmatprep.subr.bf16.mxu0 0
  %532 = vmatpush1.bf16.msra.mxu0 %v490
  %533 = vmatprep.subr.bf16.mxu0 0
  %534 = vmatpush1.bf16.msra.mxu0 %v491
  %535 = vmatprep.subr.bf16.mxu0 0
  %536 = vmatpush1.bf16.msra.mxu0 %v492
  %537 = vmatprep.subr.bf16.mxu0 0
  %538 = vmatpush1.bf16.msra.mxu0 %v493
  %539 = vmatprep.subr.bf16.mxu0 0
  %540 = vmatpush1.bf16.msra.mxu0 %v494
  %541 = vmatprep.subr.bf16.mxu0 0
  %542 = vmatpush1.bf16.msra.mxu0 %v495
  %543 = vmatprep.subr.bf16.mxu0 0
  %544 = vmatpush1.bf16.msra.mxu0 %v496
  %545 = vmatprep.mubr.bf16.mxu0 %v377
  %546 = vmatmul.mubr.bf16.gmra.mrb[0].mxu0 %v376
  %v547 = vpop.f32.mrb[0].mxu0
  %v548 = vadd.f32 %v415, %v547
  %v549 = vpop.f32.mrb[0].mxu0
  %v550 = vpop.f32.mrb[0].mxu0
  %v551 = vpop.f32.mrb[0].mxu0
  %552 = vdwg.mxu0
  %vm553 = vcmp.lt.s32.totalorder %v368, 96
  %v554 = vtanh.pop %v548
  %v555 = vsel %vm553, %v554, %v548
  %v556 = vpack.c.bf16 %v555, %v555
  %v557 = vld [vmem:[%s5] sm:$0xf]
  %v558 = vld [vmem:[%s5 + $0x4] sm:$0xf]
  %v559 = vld [vmem:[%s5 + $0x8] sm:$0xf]
  %v560 = vld [vmem:[%s5 + $0xc] sm:$0xf]
  %v561 = vld [vmem:[%s5 + $0x10] sm:$0xf]
  %v562 = vld [vmem:[%s5 + $0x14] sm:$0xf]
  %v563 = vld [vmem:[%s5 + $0x18] sm:$0xf]
  %v564 = vld [vmem:[%s5 + $0x1c] sm:$0xf]
  %v565 = vld [vmem:[%s5 + $0x20] sm:$0xf]
  %v566 = vld [vmem:[%s5 + $0x24] sm:$0xf]
  %v567 = vld [vmem:[%s5 + $0x28] sm:$0xf]
  %v568 = vld [vmem:[%s5 + $0x2c] sm:$0xf]
  %v569 = vld [vmem:[%s5 + $0x30] sm:$0xf]
  %v570 = vld [vmem:[%s5 + $0x34] sm:$0xf]
  %v571 = vld [vmem:[%s5 + $0x38] sm:$0xf]
  %v572 = vld [vmem:[%s5 + $0x3c] sm:$0xf]
  %v573 = vld [vmem:[%s6] sm:$0xf]
  %v574 = vld [vmem:[%s6 + $0x4] sm:$0xf]
  %v575 = vld [vmem:[%s6 + $0x8] sm:$0xf]
  %v576 = vld [vmem:[%s6 + $0xc] sm:$0xf]
  %v577 = vld [vmem:[%s6 + $0x10] sm:$0xf]
  %v578 = vld [vmem:[%s6 + $0x14] sm:$0xf]
  %v579 = vld [vmem:[%s6 + $0x18] sm:$0xf]
  %v580 = vld [vmem:[%s6 + $0x1c] sm:$0xf]
  %v581 = vld [vmem:[%s6 + $0x20] sm:$0xf]
  %v582 = vld [vmem:[%s6 + $0x24] sm:$0xf]
  %v583 = vld [vmem:[%s6 + $0x28] sm:$0xf]
  %v584 = vld [vmem:[%s6 + $0x2c] sm:$0xf]
  %v585 = vld [vmem:[%s6 + $0x30] sm:$0xf]
  %v586 = vld [vmem:[%s6 + $0x34] sm:$0xf]
  %v587 = vld [vmem:[%s6 + $0x38] sm:$0xf]
  %v588 = vld [vmem:[%s6 + $0x3c] sm:$0xf]
  %v589 = vld [vmem:[%s6 + $0x40] sm:$0xf]
  %v590 = vld [vmem:[%s6 + $0x44] sm:$0xf]
  %v591 = vld [vmem:[%s6 + $0x48] sm:$0xf]
  %v592 = vld [vmem:[%s6 + $0x4c] sm:$0xf]
  %v593 = vld [vmem:[%s6 + $0x50] sm:$0xf]
  %v594 = vld [vmem:[%s6 + $0x54] sm:$0xf]
  %v595 = vld [vmem:[%s6 + $0x58] sm:$0xf]
  %v596 = vld [vmem:[%s6 + $0x5c] sm:$0xf]
  %v597 = vld [vmem:[%s6 + $0x60] sm:$0xf]
  %v598 = vld [vmem:[%s6 + $0x64] sm:$0xf]
  %v599 = vld [vmem:[%s6 + $0x68] sm:$0xf]
  %v600 = vld [vmem:[%s6 + $0x6c] sm:$0xf]
  %v601 = vld [vmem:[%s6 + $0x70] sm:$0xf]
  %v602 = vld [vmem:[%s6 + $0x74] sm:$0xf]
  %v603 = vld [vmem:[%s6 + $0x78] sm:$0xf]
  %v604 = vld [vmem:[%s6 + $0x7c] sm:$0xf]
  %v605 = vld [vmem:[%s6 + $0x80] sm:$0xf]
  %v606 = vld [vmem:[%s6 + $0x84] sm:$0xf]
  %v607 = vld [vmem:[%s6 + $0x88] sm:$0xf]
  %v608 = vld [vmem:[%s6 + $0x8c] sm:$0x3]
  %v645 = vunpack.c.l.b16 %v573
  %v646 = vunpack.c.l.b16 %v574
  %v647 = vunpack.c.l.b16 %v575
  %v648 = vunpack.c.l.b16 %v576
  %v649 = vunpack.c.l.b16 %v577
  %v650 = vunpack.c.l.b16 %v578
  %v651 = vunpack.c.l.b16 %v579
  %v652 = vunpack.c.l.b16 %v580
  %v653 = vunpack.c.l.b16 %v581
  %v654 = vunpack.c.l.b16 %v582
  %v655 = vunpack.c.l.b16 %v583
  %v656 = vunpack.c.l.b16 %v584
  %v657 = vunpack.c.l.b16 %v585
  %v658 = vunpack.c.l.b16 %v586
  %v659 = vunpack.c.l.b16 %v587
  %v660 = vunpack.c.l.b16 %v588
  %v661 = vunpack.c.l.b16 %v589
  %v662 = vunpack.c.l.b16 %v590
  %v663 = vunpack.c.l.b16 %v591
  %v664 = vunpack.c.l.b16 %v592
  %v665 = vunpack.c.l.b16 %v593
  %v666 = vunpack.c.l.b16 %v594
  %v667 = vunpack.c.l.b16 %v595
  %v668 = vunpack.c.l.b16 %v596
  %v669 = vunpack.c.l.b16 %v597
  %v670 = vunpack.c.l.b16 %v598
  %v671 = vunpack.c.l.b16 %v599
  %v672 = vunpack.c.l.b16 %v600
  %v673 = vunpack.c.l.b16 %v601
  %v674 = vunpack.c.l.b16 %v602
  %v675 = vunpack.c.l.b16 %v603
  %v676 = vunpack.c.l.b16 %v604
  %v677 = vunpack.c.l.b16 %v605
  %v678 = vunpack.c.l.b16 %v606
  %v679 = vunpack.c.l.b16 %v607
  %v680 = vunpack.c.l.b16 %v608
  %v681 = vpack.c.b16 %v646, %v645
  %v682 = vpack.c.b16 %v648, %v647
  %v683 = vpack.c.b16 %v650, %v649
  %v684 = vpack.c.b16 %v652, %v651
  %v685 = vpack.c.b16 %v654, %v653
  %v686 = vpack.c.b16 %v656, %v655
  %v687 = vpack.c.b16 %v658, %v657
  %v688 = vpack.c.b16 %v660, %v659
  %v689 = vpack.c.b16 %v662, %v661
  %v690 = vpack.c.b16 %v664, %v663
  %v691 = vpack.c.b16 %v666, %v665
  %v692 = vpack.c.b16 %v668, %v667
  %v693 = vpack.c.b16 %v670, %v669
  %v694 = vpack.c.b16 %v672, %v671
  %v695 = vpack.c.b16 %v674, %v673
  %v696 = vpack.c.b16 %v676, %v675
  %v697 = vpack.c.b16 %v678, %v677
  %v698 = vpack.c.b16 %v680, %v679
  %v717 = vsel %vm278, %v698, 0
  %719 = vmatprep.subr.bf16.mxu0 0
  %720 = vmatpush1.bf16.msra.mxu0 %v681
  %721 = vmatprep.subr.bf16.mxu0 0
  %722 = vmatpush1.bf16.msra.mxu0 %v682
  %723 = vmatprep.subr.bf16.mxu0 0
  %724 = vmatpush1.bf16.msra.mxu0 %v683
  %725 = vmatprep.subr.bf16.mxu0 0
  %726 = vmatpush1.bf16.msra.mxu0 %v684
  %727 = vmatprep.subr.bf16.mxu0 0
  %728 = vmatpush1.bf16.msra.mxu0 %v685
  %729 = vmatprep.subr.bf16.mxu0 0
  %730 = vmatpush1.bf16.msra.mxu0 %v686
  %731 = vmatprep.subr.bf16.mxu0 0
  %732 = vmatpush1.bf16.msra.mxu0 %v687
  %733 = vmatprep.subr.bf16.mxu0 0
  %734 = vmatpush1.bf16.msra.mxu0 %v688
  %735 = vmatprep.subr.bf16.mxu0 0
  %736 = vmatpush1.bf16.msra.mxu0 %v689
  %737 = vmatprep.subr.bf16.mxu0 0
  %738 = vmatpush1.bf16.msra.mxu0 %v690
  %739 = vmatprep.subr.bf16.mxu0 0
  %740 = vmatpush1.bf16.msra.mxu0 %v691
  %741 = vmatprep.subr.bf16.mxu0 0
  %742 = vmatpush1.bf16.msra.mxu0 %v692
  %743 = vmatprep.subr.bf16.mxu0 0
  %744 = vmatpush1.bf16.msra.mxu0 %v693
  %745 = vmatprep.subr.bf16.mxu0 0
  %746 = vmatpush1.bf16.msra.mxu0 %v694
  %747 = vmatprep.subr.bf16.mxu0 0
  %748 = vmatpush1.bf16.msra.mxu0 %v695
  %749 = vmatprep.subr.bf16.mxu0 0
  %750 = vmatpush1.bf16.msra.mxu0 %v696
  %751 = vmatprep.mubr.bf16.mxu0 %v92
  %752 = vmatmul.mubr.bf16.gmra.mrb[0].mxu0 %v91
  %v753 = vpop.f32.mrb[0].mxu0
  %v754 = vadd.f32 0.0, %v753
  %v755 = vpop.f32.mrb[0].mxu0
  %v756 = vpop.f32.mrb[0].mxu0
  %v757 = vpop.f32.mrb[0].mxu0
  %758 = vdwg.mxu0
  %759 = vmatprep.subr.bf16.mxu0 0
  %760 = vmatpush1.bf16.msra.mxu0 %v697
  %761 = vmatprep.subr.bf16.mxu0 0
  %762 = vmatpush1.bf16.msra.mxu0 %v717
  %763 = vmatprep.subr.bf16.mxu0 0
  %764 = vmatpush1.bf16.msra.mxu0 0
  %765 = vmatprep.subr.bf16.mxu0 0
  %766 = vmatpush1.bf16.msra.mxu0 0
  %767 = vmatprep.subr.bf16.mxu0 0
  %768 = vmatpush1.bf16.msra.mxu0 0
  %769 = vmatprep.subr.bf16.mxu0 0
  %770 = vmatpush1.bf16.msra.mxu0 0
  %771 = vmatprep.subr.bf16.mxu0 0
  %772 = vmatpush1.bf16.msra.mxu0 0
  %773 = vmatprep.subr.bf16.mxu0 0
  %774 = vmatpush1.bf16.msra.mxu0 0
  %775 = vmatprep.subr.bf16.mxu0 0
  %776 = vmatpush1.bf16.msra.mxu0 0
  %777 = vmatprep.subr.bf16.mxu0 0
  %778 = vmatpush1.bf16.msra.mxu0 0
  %779 = vmatprep.subr.bf16.mxu0 0
  %780 = vmatpush1.bf16.msra.mxu0 0
  %781 = vmatprep.subr.bf16.mxu0 0
  %782 = vmatpush1.bf16.msra.mxu0 0
  %783 = vmatprep.subr.bf16.mxu0 0
  %784 = vmatpush1.bf16.msra.mxu0 0
  %785 = vmatprep.subr.bf16.mxu0 0
  %786 = vmatpush1.bf16.msra.mxu0 0
  %787 = vmatprep.subr.bf16.mxu0 0
  %788 = vmatpush1.bf16.msra.mxu0 0
  %789 = vmatprep.subr.bf16.mxu0 0
  %790 = vmatpush1.bf16.msra.mxu0 0
  %791 = vmatprep.mubr.bf16.mxu0 0
  %792 = vmatmul.mubr.bf16.gmra.mrb[0].mxu0 %v276
  %v793 = vpop.f32.mrb[0].mxu0
  %v794 = vadd.f32 %v754, %v793
  %v795 = vpop.f32.mrb[0].mxu0
  %v796 = vpop.f32.mrb[0].mxu0
  %v797 = vpop.f32.mrb[0].mxu0
  %798 = vdwg.mxu0
  %v815 = vunpack.c.l.b16 %v557
  %v816 = vunpack.c.l.b16 %v558
  %v817 = vunpack.c.l.b16 %v559
  %v818 = vunpack.c.l.b16 %v560
  %v819 = vunpack.c.l.b16 %v561
  %v820 = vunpack.c.l.b16 %v562
  %v821 = vunpack.c.l.b16 %v563
  %v822 = vunpack.c.l.b16 %v564
  %v823 = vunpack.c.l.b16 %v565
  %v824 = vunpack.c.l.b16 %v566
  %v825 = vunpack.c.l.b16 %v567
  %v826 = vunpack.c.l.b16 %v568
  %v827 = vunpack.c.l.b16 %v569
  %v828 = vunpack.c.l.b16 %v570
  %v829 = vunpack.c.l.b16 %v571
  %v830 = vunpack.c.l.b16 %v572
  %v831 = vpack.c.b16 %v816, %v815
  %v832 = vpack.c.b16 %v818, %v817
  %v833 = vpack.c.b16 %v820, %v819
  %v834 = vpack.c.b16 %v822, %v821
  %v835 = vpack.c.b16 %v824, %v823
  %v836 = vpack.c.b16 %v826, %v825
  %v837 = vpack.c.b16 %v828, %v827
  %v838 = vpack.c.b16 %v830, %v829
  %847 = vmatprep.subr.bf16.mxu0 0
  %848 = vmatpush1.bf16.msra.mxu0 %v831
  %849 = vmatprep.subr.bf16.mxu0 0
  %850 = vmatpush1.bf16.msra.mxu0 %v832
  %851 = vmatprep.subr.bf16.mxu0 0
  %852 = vmatpush1.bf16.msra.mxu0 %v833
  %853 = vmatprep.subr.bf16.mxu0 0
  %854 = vmatpush1.bf16.msra.mxu0 %v834
  %855 = vmatprep.subr.bf16.mxu0 0
  %856 = vmatpush1.bf16.msra.mxu0 %v835
  %857 = vmatprep.subr.bf16.mxu0 0
  %858 = vmatpush1.bf16.msra.mxu0 %v836
  %859 = vmatprep.subr.bf16.mxu0 0
  %860 = vmatpush1.bf16.msra.mxu0 %v837
  %861 = vmatprep.subr.bf16.mxu0 0
  %862 = vmatpush1.bf16.msra.mxu0 %v838
  %863 = vmatprep.subr.bf16.mxu0 0
  %864 = vmatpush1.bf16.msra.mxu0 0
  %865 = vmatprep.subr.bf16.mxu0 0
  %866 = vmatpush1.bf16.msra.mxu0 0
  %867 = vmatprep.subr.bf16.mxu0 0
  %868 = vmatpush1.bf16.msra.mxu0 0
  %869 = vmatprep.subr.bf16.mxu0 0
  %870 = vmatpush1.bf16.msra.mxu0 0
  %871 = vmatprep.subr.bf16.mxu0 0
  %872 = vmatpush1.bf16.msra.mxu0 0
  %873 = vmatprep.subr.bf16.mxu0 0
  %874 = vmatpush1.bf16.msra.mxu0 0
  %875 = vmatprep.subr.bf16.mxu0 0
  %876 = vmatpush1.bf16.msra.mxu0 0
  %877 = vmatprep.subr.bf16.mxu0 0
  %878 = vmatpush1.bf16.msra.mxu0 0
  %879 = vmatprep.mubr.bf16.mxu0 0
  %880 = vmatmul.mubr.bf16.gmra.mrb[0].mxu0 %v556
  %v881 = vpop.f32.mrb[0].mxu0
  %v882 = vadd.f32 %v794, %v881
  %v883 = vpop.f32.mrb[0].mxu0
  %v884 = vpop.f32.mrb[0].mxu0
  %v885 = vpop.f32.mrb[0].mxu0
  %886 = vdwg.mxu0
  %v887 = vld [vmem:[%s7] sm:$0x1]
  %v889 = vlaneseq
  %v890 = vshrl.u32 %v889, 7
  %v891 = vsub.s32 0, %v890
  %v892 = vrot.slane %v887, %v891
  %v894 = vadd.f32 %v882, %v892
  %v895 = vpack.c.bf16 %v894, %v894
  %v896 = vld [vmem:[%s8] sm:$0xf]
  %v897 = vld [vmem:[%s8 + $0x4] sm:$0xf]
  %v898 = vld [vmem:[%s8 + $0x8] sm:$0xf]
  %v899 = vld [vmem:[%s8 + $0xc] sm:$0xf]
  %v900 = vld [vmem:[%s8 + $0x10] sm:$0xf]
  %v901 = vld [vmem:[%s8 + $0x14] sm:$0xf]
  %v902 = vld [vmem:[%s8 + $0x18] sm:$0xf]
  %v903 = vld [vmem:[%s8 + $0x1c] sm:$0xf]
  %v904 = vld [vmem:[%s9] sm:$0x1]
  %v906 = vlaneseq
  %v907 = vshrl.u32 %v906, 7
  %v908 = vsub.s32 0, %v907
  %v909 = vrot.slane %v904, %v908
  %v919 = vunpack.c.l.b16 %v896
  %v920 = vunpack.c.l.b16 %v897
  %v921 = vunpack.c.l.b16 %v898
  %v922 = vunpack.c.l.b16 %v899
  %v923 = vunpack.c.l.b16 %v900
  %v924 = vunpack.c.l.b16 %v901
  %v925 = vunpack.c.l.b16 %v902
  %v926 = vunpack.c.l.b16 %v903
  %v927 = vpack.c.b16 %v920, %v919
  %v928 = vpack.c.b16 %v922, %v921
  %v929 = vpack.c.b16 %v924, %v923
  %v930 = vpack.c.b16 %v926, %v925
  %vm935 = vcmask 523264
  %v937 = vsel %vm935, %v895, 0
  %939 = vmatprep.subr.bf16.mxu0 0
  %940 = vmatpush1.bf16.msra.mxu0 %v927
  %941 = vmatprep.subr.bf16.mxu0 0
  %942 = vmatpush1.bf16.msra.mxu0 %v928
  %943 = vmatprep.subr.bf16.mxu0 0
  %944 = vmatpush1.bf16.msra.mxu0 %v929
  %945 = vmatprep.subr.bf16.mxu0 0
  %946 = vmatpush1.bf16.msra.mxu0 %v930
  %947 = vmatprep.subr.bf16.mxu0 0
  %948 = vmatpush1.bf16.msra.mxu0 0
  %949 = vmatprep.subr.bf16.mxu0 0
  %950 = vmatpush1.bf16.msra.mxu0 0
  %951 = vmatprep.subr.bf16.mxu0 0
  %952 = vmatpush1.bf16.msra.mxu0 0
  %953 = vmatprep.subr.bf16.mxu0 0
  %954 = vmatpush1.bf16.msra.mxu0 0
  %955 = vmatprep.subr.bf16.mxu0 0
  %956 = vmatpush1.bf16.msra.mxu0 0
  %957 = vmatprep.subr.bf16.mxu0 0
  %958 = vmatpush1.bf16.msra.mxu0 0
  %959 = vmatprep.subr.bf16.mxu0 0
  %960 = vmatpush1.bf16.msra.mxu0 0
  %961 = vmatprep.subr.bf16.mxu0 0
  %962 = vmatpush1.bf16.msra.mxu0 0
  %963 = vmatprep.subr.bf16.mxu0 0
  %964 = vmatpush1.bf16.msra.mxu0 0
  %965 = vmatprep.subr.bf16.mxu0 0
  %966 = vmatpush1.bf16.msra.mxu0 0
  %967 = vmatprep.subr.bf16.mxu0 0
  %968 = vmatpush1.bf16.msra.mxu0 0
  %969 = vmatprep.subr.bf16.mxu0 0
  %970 = vmatpush1.bf16.msra.mxu0 0
  %971 = vmatprep.mubr.bf16.mxu0 0
  %972 = vmatmul.mubr.bf16.gmra.mrb[0].mxu0 %v937
  %v973 = vpop.f32.mrb[0].mxu0
  %v974 = vadd.f32 %v909, %v973
  %v975 = vpop.f32.mrb[0].mxu0
  %v976 = vpop.f32.mrb[0].mxu0
  %v977 = vpop.f32.mrb[0].mxu0
  %978 = vdwg.mxu0
  %979 = vst [vmem:[%s10] sm:$0xff] %v974
  // Predicated region
  $region42: #{estimator_forward.1} parent=0 // pred_check
    _
  $region43: #{estimator_forward.1} parent=0 // pred_check_branch
    %981 = sbr.rel (0) target = $region45
  $region44: #{estimator_forward.1} parent=0 // pred_region
    _
  $region45: #{estimator_forward.1} parent=0 // pred_fallthru
    _
  // Predicated region
  $region46: #{estimator_forward.1} parent=0 // pred_check
    _
  $region47: #{estimator_forward.1} parent=0 // pred_check_branch
    %983 = sbr.rel (0) target = $region49
  $region48: #{estimator_forward.1} parent=0 // pred_region
    _
  $region49: #{estimator_forward.1} parent=0 // pred_fallthru
    _

</llo_original>
